<compile_context>
chip_gen: v7x
topology: tpu7x:2x2x1
jax: 0.10.0
libtpu: 0.0.40
codegen_flags: <defaults>
</compile_context>

<pallas_src>
import jax
import jax.numpy as jnp
from jax.experimental import pallas as pl
from jax.experimental.pallas import tpu as pltpu


def _input_layer_kernel(const_ref, out_ref):
    # const_ref: (1, CHW) resident constant tile (same block every grid step)
    # out_ref:   (TB, CHW) lane-dense output tile for the current batch block
    out_ref[...] = jnp.broadcast_to(const_ref[...], out_ref.shape)


def input_layer_forward(const, w):
    """const: (1, C, H, W) parameter; w: (N, w_dim) latents (values unused)."""
    n = w.shape[0]
    _, c, h, w_res = const.shape
    chw = c * h * w_res

    if n == 0:
        # Degenerate batch: nothing to compute.
        return jnp.zeros((0, c, h, w_res), dtype=const.dtype)

    # Lane-dense 2D view of the constant.
    const_flat = const.reshape(1, chw)

    # Batch tile: full batch if small (block == full dim is always legal),
    # otherwise 512 rows (multiple of 8 sublanes; ~2 MiB f32 blocks with
    # CHW=1024, well under scoped VMEM even on v7x with double buffering).
    tb = n if n <= 512 else 512
    grid = (pl.cdiv(n, tb),)

    out_flat = pl.pallas_call(
        _input_layer_kernel,
        out_shape=jax.ShapeDtypeStruct((n, chw), const.dtype),
        grid_spec=pltpu.PrefetchScalarGridSpec(
            num_scalar_prefetch=0,
            grid=grid,
            in_specs=[
                # Constant index_map -> const stays resident; no per-step DMA.
                pl.BlockSpec((1, chw), lambda i: (0, 0)),
            ],
            out_specs=pl.BlockSpec((tb, chw), lambda i: (i, 0)),
        ),
        compiler_params=pltpu.CompilerParams(
            dimension_semantics=("parallel",),
        ),
    )(const_flat)

    return out_flat.reshape(n, c, h, w_res)


if __name__ == "__main__":
    key = jax.random.PRNGKey(0)
    k_const, k_w = jax.random.split(key)

    init_res = 16
    channels = 4
    batch = 2
    w_dim = 32

    # Deterministic "parameter" init (matches nn.Parameter(torch.randn(1, C, H, W)) shape).
    const = jax.random.normal(
        k_const, (1, channels, init_res, init_res), dtype=jnp.float32
    )
    w = jax.random.normal(k_w, (batch, w_dim), dtype=jnp.float32)

    out = input_layer_forward(const, w)
    out = jax.block_until_ready(out)

    # Reference check: output is const broadcast over the batch axis.
    ref = jnp.broadcast_to(const, (batch, channels, init_res, init_res))
    assert out.shape == (batch, channels, init_res, init_res)
    assert out.dtype == jnp.float32
    assert jnp.array_equal(out, ref)

    print("KERNEL_OK")
</pallas_src>

<mosaic_0001>
module attributes {stable_mosaic.version = 11 : i64} {
  func.func @_input_layer_kernel(%arg0: i32, %arg1: memref<1x1024xf32, #tpu.memory_space<vmem>>, %arg2: memref<2x1024xf32, #tpu.memory_space<vmem>>) attributes {dimension_semantics = [#tpu.dimension_semantics<parallel>], iteration_bounds = array<i64: 1>, scalar_prefetch = 0 : i64, scratch_operands = 0 : i64, tpu.core_type = #tpu.core_type<tc>, window_params = [{pipeline_mode = #tpu.pipeline_mode<synchronous>, transform_indices = @transform_0, window_bounds = array<i64: 1, 1024>}, {transform_indices = @transform_1, window_bounds = array<i64: 2, 1024>}]} {
    %c0 = arith.constant 0 : index
    %c0_0 = arith.constant 0 : index
    %0 = vector.load %arg1[%c0, %c0_0] : memref<1x1024xf32, #tpu.memory_space<vmem>>, vector<1x1024xf32>
    %1 = vector.shape_cast %0 : vector<1x1024xf32> to vector<1x1024xf32>
    %2 = vector.broadcast %1 : vector<1x1024xf32> to vector<2x1024xf32>
    %c0_1 = arith.constant 0 : index
    %c0_2 = arith.constant 0 : index
    %3 = vector.load %arg2[%c0_1, %c0_2] : memref<2x1024xf32, #tpu.memory_space<vmem>>, vector<2x1024xf32>
    tpu.vector_store %arg2[%c0_1, %c0_2], %2 {strides = array<i32>} : memref<2x1024xf32, #tpu.memory_space<vmem>>, vector<2x1024xf32>,
    return
  }
  func.func @transform_0(%arg0: i32) -> (i32, i32) {
    %c0_i32 = arith.constant 0 : i32
    %c0_i32_0 = arith.constant 0 : i32
    %c0_i32_1 = arith.constant 0 : i32
    return %c0_i32, %c0_i32_0 : i32, i32
  }
  func.func @transform_1(%arg0: i32) -> (i32, i32) {
    %c0_i32 = arith.constant 0 : i32
    %c0_i32_0 = arith.constant 0 : i32
    return %arg0, %c0_i32 : i32, i32
  }
}

</mosaic_0001>

<llo_original>
// kernel: tpu_custom_call.1
$region0: #{tpu_custom_call.1}
  #allocation0 [shape = 'u32[]', space=smem, size = 0x4, offset = 0x4, fixed_abs, tag = 'smem constant byte address 0x4 - core index']
  #allocation1 [shape = 'u32[144,128]{1,0:T(1,128)}', space=vmem, size = 0x12000, scoped, tag = 'internal scratch']
  %s0 = inlined_call_operand.hbm [shape: f32[1,1024], index: 0, kind: input, shape index: {}]
  %s1 = inlined_call_operand.hbm [shape: f32[2,1024], index: 1, kind: output, shape index: {}]
  %s2 = sld [smem:[#allocation0]]
  $region18: #{tpu_custom_call.1} parent=0
    _
  %s4 = ssub.s32 1, %s2
  %s5 = scalar_select 0, %s4, %s2
  $region1: #{tpu_custom_call.1} parent=0
    #allocation2 [shape = 'u8[4096]{0}', space=vmem, size = 0x1000, scoped, tag = 'input window, operand 0, single buffered']
    #allocation3 [shape = 's32[1]{0}', space=sflag, size = 0x4, scoped, tag = 'scoped memory for tpu_custom_call.1']
    #allocation4 [shape = 's32[1]{0}', space=sflag, size = 0x4, scoped, tag = 'scoped memory for tpu_custom_call.1']
    #allocation5 [shape = 'u8[8192]{0}', space=vmem, size = 0x2000, scoped, tag = 'output window, operand 0, single buffered']
    %6 = vsyncpa [#allocation3], 0
    %7 = vsyncpa [#allocation4], 0
    // Predicated region
    $region2: #{tpu_custom_call.1} parent=1 // pred_check
      _
    $region3: #{tpu_custom_call.1} parent=1 // pred_check_branch
      %9 = sbr.rel (0) target = $region5
    $region4: #{tpu_custom_call.1} parent=1 // pred_region
      %s11 = ssub.s32 128, 128
      %12 = vsyncadd [#allocation3], %s11
      %s14 = sshll.u32 [#allocation2], 4
      %s15 = int_to_ptr.vmem [resolvable:$true] %s14
      %17 = dma.hbm_to_vmem [thread:$0]  %s0, 128, %s15, [#allocation3]
    $region5: #{tpu_custom_call.1} parent=1 // pred_fallthru
      _
    // Predicated region
    $region6: #{tpu_custom_call.1} parent=1 // pred_check
      _
    $region7: #{tpu_custom_call.1} parent=1 // pred_check_branch
      %19 = sbr.rel (0) target = $region9
    $region8: #{tpu_custom_call.1} parent=1 // pred_region
      %20 = dma.done [#allocation3], 128
    $region9: #{tpu_custom_call.1} parent=1 // pred_fallthru
      _
    %v21 = vld [vmem:[#allocation2] sm:$0xff]
    %v23 = vlaneseq
    %v24 = vshrl.u32 %v23, 7
    %v25 = vsub.s32 0, %v24
    %v26 = vrot.slane %v21, %v25
    %v27 = vlaneseq
    %v28 = vshrl.u32 %v27, 7
    %v29 = vsub.s32 1, %v28
    %v30 = vrot.slane %v21, %v29
    %v31 = vlaneseq
    %v32 = vshrl.u32 %v31, 7
    %v33 = vsub.s32 2, %v32
    %v34 = vrot.slane %v21, %v33
    %v35 = vlaneseq
    %v36 = vshrl.u32 %v35, 7
    %v37 = vsub.s32 3, %v36
    %v38 = vrot.slane %v21, %v37
    %v39 = vlaneseq
    %v40 = vshrl.u32 %v39, 7
    %v41 = vsub.s32 4, %v40
    %v42 = vrot.slane %v21, %v41
    %v43 = vlaneseq
    %v44 = vshrl.u32 %v43, 7
    %v45 = vsub.s32 5, %v44
    %v46 = vrot.slane %v21, %v45
    %v47 = vlaneseq
    %v48 = vshrl.u32 %v47, 7
    %v49 = vsub.s32 6, %v48
    %v50 = vrot.slane %v21, %v49
    %v51 = vlaneseq
    %v52 = vshrl.u32 %v51, 7
    %v53 = vsub.s32 7, %v52
    %v54 = vrot.slane %v21, %v53
    %v55 = vcombine.low %v26, %v30
    %v56 = vcombine.low %v34, %v38
    %v58 = vunpack.c.l.s4 1983009808
    %v59 = vunpack.c.0.s8 %v58
    %v60 = vlaneseq
    %v61 = vshrl.u32 %v60, 7
    %v62 = vsub.s32 %v59, %v61
    %v63 = vrot.slane %v55, %v62
    %v65 = vunpack.c.l.s4 1983009808
    %v66 = vunpack.c.0.s8 %v65
    %v67 = vlaneseq
    %v68 = vshrl.u32 %v67, 7
    %v69 = vsub.s32 %v66, %v68
    %v70 = vrot.slane %v56, %v69
    %v71 = vcombine.low %v63, %v70
    %v72 = vcombine.low %v42, %v46
    %v73 = vcombine.low %v50, %v54
    %v75 = vunpack.c.l.s4 1983009808
    %v76 = vunpack.c.0.s8 %v75
    %v77 = vlaneseq
    %v78 = vshrl.u32 %v77, 7
    %v79 = vsub.s32 %v76, %v78
    %v80 = vrot.slane %v72, %v79
    %v82 = vunpack.c.l.s4 1983009808
    %v83 = vunpack.c.0.s8 %v82
    %v84 = vlaneseq
    %v85 = vshrl.u32 %v84, 7
    %v86 = vsub.s32 %v83, %v85
    %v87 = vrot.slane %v73, %v86
    %v88 = vcombine.low %v80, %v87
    %91 = vst [vmem:[#allocation5] sm:$0xff] %v71
    %92 = vst [vmem:[#allocation5 + $0x8] sm:$0xff] %v88
    // Predicated region
    $region10: #{tpu_custom_call.1} parent=1 // pred_check
      _
    $region11: #{tpu_custom_call.1} parent=1 // pred_check_branch
      %94 = sbr.rel (0) target = $region13
    $region12: #{tpu_custom_call.1} parent=1 // pred_region
      %s96 = ssub.s32 256, 256
      %97 = vsyncadd [#allocation4], %s96
      %s99 = sshll.u32 [#allocation5], 4
      %s100 = int_to_ptr.vmem [resolvable:$true] %s99
      %102 = dma.vmem_to_hbm [thread:$0]  %s100, 256, %s1, [#allocation4]
    $region13: #{tpu_custom_call.1} parent=1 // pred_fallthru
      _
    // Predicated region
    $region14: #{tpu_custom_call.1} parent=1 // pred_check
      _
    $region15: #{tpu_custom_call.1} parent=1 // pred_check_branch
      %104 = sbr.rel (0) target = $region17
    $region16: #{tpu_custom_call.1} parent=1 // pred_region
      %105 = dma.done [#allocation4], 256
    $region17: #{tpu_custom_call.1} parent=1 // pred_fallthru
      _
    %106 = vsyncpa [#allocation3], 1
    %107 = vsyncpa [#allocation4], 1

</llo_original>
